<compile_context>
chip_gen: v7x
topology: tpu7x:2x2x1
jax: 0.10.0
libtpu: 0.0.40
codegen_flags: <defaults>
</compile_context>

<pallas_src>
import jax
import jax.numpy as jnp
from jax.experimental import pallas as pl
from jax.experimental.pallas import tpu as pltpu
import numpy as np


def _round_up(x, m):
    return (x + m - 1) // m * m


def childsum_kernel(edges_ref, h0_ref, w_ref, out_ref):
    """Fused ChildSum forward on pre-reduced inputs.

    w_ref rows are packed as:
      rows [0:H)      -> h0-part of [U | W], pre-transposed          (H, P)
      rows [H:H+E)    -> embedding table folded into edge-part       (E, P)
      row  [H+E]      -> packed biases [u_b | w_b] (zero padded)     (1, P)

    out(1, P) = sum_n(h0) @ W_h  +  counts(edges) @ (emb @ W_e)  +  N * b
    """
    n, H = h0_ref.shape                 # children count, hidden size (static)
    E = w_ref.shape[0] - H - 1          # edge vocabulary size (static)

    # Children-sum of the hidden states                         -> (1, H)
    h_sum = jnp.sum(h0_ref[...], axis=0, keepdims=True)

    # Per-edge-id counts: counts[j] = #{ n : edges[n] == j }    -> (1, E)
    ids = jax.lax.broadcasted_iota(jnp.int32, (n, E), 1)
    counts = jnp.sum((edges_ref[...] == ids).astype(jnp.float32),
                     axis=0, keepdims=True)

    # Fused U/W linear on the pre-reduced inputs.  Bias scaled by N preserves
    # the "add bias per row, then sum over rows" semantics.  Static ref slices
    # below are sublane-tile aligned (H and H+E are multiples of 8 here).
    out_ref[...] = (
        jnp.dot(h_sum, w_ref[0:H, :], preferred_element_type=jnp.float32)
        + jnp.dot(counts, w_ref[H:H + E, :], preferred_element_type=jnp.float32)
        + float(n) * w_ref[H + E:H + E + 1, :]
    )


def pack_params(params):
    """One-time parameter prep (hoisted out of the per-call path).

    Returns dict with:
      w : (H+E+1, P) fp32, P = max(128, round_up(2H, 128)); rows are
          [ W_h (H,2H) | emb @ W_e (E,2H) | bias (1,2H) ], zero-padded in lanes.
      H, E, P : python ints describing the packing.
    """
    emb, u_w, u_b, w_w, w_b = (params["emb"], params["u_w"], params["u_b"],
                               params["w_w"], params["w_b"])
    H = u_w.shape[0]                       # hidden_size (PyTorch weight: (out, in))
    E = emb.shape[0]                       # edge vocabulary size
    P = max(128, _round_up(2 * H, 128))    # lane-dense packed output width

    # cat order is (h0, edge_states): columns [:H] act on h0, [H:] on embeddings.
    w_h = jnp.concatenate(
        [jnp.transpose(u_w[:, :H]), jnp.transpose(w_w[:, :H])], axis=1)  # (H, 2H)
    w_e = jnp.concatenate(
        [jnp.transpose(u_w[:, H:]), jnp.transpose(w_w[:, H:])], axis=1)  # (D, 2H)
    emb_w = jnp.dot(emb, w_e)                                            # (E, 2H)
    b = jnp.concatenate([u_b, w_b]).reshape(1, 2 * H)                    # (1, 2H)

    packed = jnp.concatenate([w_h, emb_w, b], axis=0)                    # (H+E+1, 2H)
    packed = jnp.pad(packed, ((0, 0), (0, P - 2 * H)))                   # (H+E+1, P)
    return {"w": packed, "H": H, "E": E, "P": P}


def childsum_forward(edges, hidden_states, packed):
    """Forward pass using pre-packed parameters (see pack_params).

    edges:         (N, 1) int32
    hidden_states: tuple (h0, h1), each (N, 1, H) fp32 (h1 unused, as in torch)
    returns:       (hidden, cell), each (1, 1, H) fp32
    """
    h0, _h1 = hidden_states
    N = edges.shape[0]
    H, P = packed["H"], packed["P"]

    edges_2d = edges.reshape(N, 1).astype(jnp.int32)
    h0_2d = h0.reshape(N, H)

    vmem = pl.BlockSpec(memory_space=pltpu.MemorySpace.VMEM)
    out = pl.pallas_call(
        childsum_kernel,
        out_shape=jax.ShapeDtypeStruct((1, P), jnp.float32),
        in_specs=[vmem, vmem, vmem],
        out_specs=vmem,
    )(edges_2d, h0_2d, packed["w"])

    hidden = out[:, :H].reshape(1, 1, H)
    cell = out[:, H:2 * H].reshape(1, 1, H)
    return hidden, cell


def childsum_reference(edges, hidden_states, params):
    """Pure-JAX reference mirroring the PyTorch forward exactly."""
    emb, u_w, u_b, w_w, w_b = (params["emb"], params["u_w"], params["u_b"],
                               params["w_w"], params["w_b"])
    h0, _h1 = hidden_states
    edge_states = emb[edges]                                 # (N, 1, D)
    x = jnp.concatenate((h0, edge_states), axis=2)           # (N, 1, H+D)
    hidden_all = jnp.einsum("nbk,hk->nbh", x, u_w) + u_b
    cell_all = jnp.einsum("nbk,hk->nbh", x, w_w) + w_b
    hidden = jnp.sum(hidden_all, axis=0).reshape(1, 1, -1)
    cell = jnp.sum(cell_all, axis=0).reshape(1, 1, -1)
    return hidden, cell


if __name__ == "__main__":
    # Small, deterministic configuration.
    edge_size = 16
    edge_embedding_size = 32
    hidden_size = 32
    num_children = 8

    key = jax.random.PRNGKey(0)
    k_emb, k_uw, k_ub, k_ww, k_wb, k_e, k_h0, k_h1 = jax.random.split(key, 8)

    params = {
        # nn.Embedding(edge_size, edge_embedding_size).weight
        "emb": jax.random.normal(k_emb, (edge_size, edge_embedding_size),
                                 jnp.float32) * 0.1,
        # nn.Linear(edge_embedding_size + hidden_size, hidden_size):
        #   weight (out, in), bias (out,)
        "u_w": jax.random.normal(
            k_uw, (hidden_size, edge_embedding_size + hidden_size),
            jnp.float32) * 0.1,
        "u_b": jax.random.normal(k_ub, (hidden_size,), jnp.float32) * 0.1,
        "w_w": jax.random.normal(
            k_ww, (hidden_size, edge_embedding_size + hidden_size),
            jnp.float32) * 0.1,
        "w_b": jax.random.normal(k_wb, (hidden_size,), jnp.float32) * 0.1,
    }

    edges = jax.random.randint(k_e, (num_children, 1), 0, edge_size, jnp.int32)
    h0 = jax.random.normal(k_h0, (num_children, 1, hidden_size), jnp.float32)
    h1 = jax.random.normal(k_h1, (num_children, 1, hidden_size), jnp.float32)

    # One-time parameter packing (hoisted off the per-call path).
    packed = pack_params(params)
    jax.block_until_ready(packed["w"])

    hidden, cell = childsum_forward(edges, (h0, h1), packed)
    jax.block_until_ready((hidden, cell))

    hidden_ref, cell_ref = childsum_reference(edges, (h0, h1), params)
    np.testing.assert_allclose(np.asarray(hidden), np.asarray(hidden_ref),
                               rtol=1e-5, atol=1e-5)
    np.testing.assert_allclose(np.asarray(cell), np.asarray(cell_ref),
                               rtol=1e-5, atol=1e-5)

    assert hidden.shape == (1, 1, hidden_size)
    assert cell.shape == (1, 1, hidden_size)

    print("KERNEL_OK")
</pallas_src>

<mosaic_0001>
module attributes {stable_mosaic.version = 11 : i64} {
  func.func @childsum_kernel(%arg0: memref<8x1xi32, #tpu.memory_space<vmem>>, %arg1: memref<8x32xf32, #tpu.memory_space<vmem>>, %arg2: memref<49x128xf32, #tpu.memory_space<vmem>>, %arg3: memref<1x128xf32, #tpu.memory_space<vmem>>) attributes {dimension_semantics = [], scalar_prefetch = 0 : i64, scratch_operands = 0 : i64, tpu.core_type = #tpu.core_type<tc>} {
    %c0 = arith.constant 0 : index
    %c0_0 = arith.constant 0 : index
    %0 = vector.load %arg1[%c0, %c0_0] : memref<8x32xf32, #tpu.memory_space<vmem>>, vector<8x32xf32>
    %cst = arith.constant dense<0.000000e+00> : vector<32xf32>
    %1 = vector.multi_reduction <add>, %0, %cst [0] : vector<8x32xf32> to vector<32xf32>
    %2 = vector.shape_cast %1 : vector<32xf32> to vector<1x32xf32>
    %3 = tpu.iota {dimensions = array<i32: 1>} : vector<8x16xi32>
    %c0_1 = arith.constant 0 : index
    %c0_2 = arith.constant 0 : index
    %4 = vector.load %arg0[%c0_1, %c0_2] : memref<8x1xi32, #tpu.memory_space<vmem>>, vector<8x1xi32>
    %5 = vector.broadcast %4 : vector<8x1xi32> to vector<8x16xi32>
    %6 = arith.cmpi eq, %5, %3 : vector<8x16xi32>
    %7 = arith.extui %6 : vector<8x16xi1> to vector<8x16xi32>
    %8 = arith.sitofp %7 : vector<8x16xi32> to vector<8x16xf32>
    %cst_3 = arith.constant dense<0.000000e+00> : vector<16xf32>
    %9 = vector.multi_reduction <add>, %8, %cst_3 [0] : vector<8x16xf32> to vector<16xf32>
    %10 = vector.shape_cast %9 : vector<16xf32> to vector<1x16xf32>
    %c0_4 = arith.constant 0 : index
    %c0_5 = arith.constant 0 : index
    %11 = vector.load %arg2[%c0_4, %c0_5] : memref<49x128xf32, #tpu.memory_space<vmem>>, vector<32x128xf32>
    %cst_6 = arith.constant dense<0.000000e+00> : vector<1x128xf32>
    %12 = tpu.matmul %2, %11, %cst_6 {dimension_numbers = #tpu.dot_dimension_numbers<[1], [0], [0], [1], [0, 0, 1, 1], [], []>} : vector<1x32xf32>, vector<32x128xf32>, vector<1x128xf32> -> vector<1x128xf32>
    %c32 = arith.constant 32 : index
    %c0_7 = arith.constant 0 : index
    %13 = vector.load %arg2[%c32, %c0_7] : memref<49x128xf32, #tpu.memory_space<vmem>>, vector<16x128xf32>
    %cst_8 = arith.constant dense<0.000000e+00> : vector<1x128xf32>
    %14 = tpu.matmul %10, %13, %cst_8 {dimension_numbers = #tpu.dot_dimension_numbers<[1], [0], [0], [1], [0, 0, 1, 1], [], []>} : vector<1x16xf32>, vector<16x128xf32>, vector<1x128xf32> -> vector<1x128xf32>
    %15 = arith.addf %12, %14 : vector<1x128xf32>
    %c48 = arith.constant 48 : index
    %c0_9 = arith.constant 0 : index
    %16 = vector.load %arg2[%c48, %c0_9] : memref<49x128xf32, #tpu.memory_space<vmem>>, vector<1x128xf32>
    %cst_10 = arith.constant 8.000000e+00 : f32
    %17 = vector.broadcast %cst_10 : f32 to vector<1x128xf32>
    %18 = arith.mulf %17, %16 : vector<1x128xf32>
    %19 = arith.addf %15, %18 : vector<1x128xf32>
    %c0_11 = arith.constant 0 : index
    %c0_12 = arith.constant 0 : index
    %20 = vector.load %arg3[%c0_11, %c0_12] : memref<1x128xf32, #tpu.memory_space<vmem>>, vector<1x128xf32>
    tpu.vector_store %arg3[%c0_11, %c0_12], %19 {strides = array<i32>} : memref<1x128xf32, #tpu.memory_space<vmem>>, vector<1x128xf32>,
    return
  }
}

</mosaic_0001>

<llo_original>
// kernel: tpu_custom_call.1
$region0: #{tpu_custom_call.1}
  #allocation0 [shape = 'u32[]', space=smem, size = 0x4, offset = 0x4, fixed_abs, tag = 'smem constant byte address 0x4 - core index']
  #allocation1 [shape = 'u32[144,128]{1,0:T(1,128)}', space=vmem, size = 0x12000, scoped, tag = 'internal scratch']
  %s0 = inlined_call_operand.vmem [shape: s32[8,1], index: 0, kind: input, shape index: {}]
  %s1 = inlined_call_operand.vmem [shape: f32[8,32], index: 1, kind: input, shape index: {}]
  %s2 = inlined_call_operand.hbm [shape: f32[49,128], index: 2, kind: input, shape index: {}]
  %s3 = inlined_call_operand.hbm [shape: f32[1,128], index: 3, kind: output, shape index: {}]
  %s4 = sld [smem:[#allocation0]]
  $region26: #{tpu_custom_call.1} parent=0
    _
  %s6 = ssub.s32 1, %s4
  %s7 = scalar_select 0, %s6, %s4
  $region1: #{tpu_custom_call.1} parent=0
    #allocation2 [shape = 'u8[28672]{0}', space=vmem, size = 0x7000, scoped, tag = 'input window, operand 2, single buffered']
    #allocation3 [shape = 's32[1]{0}', space=sflag, size = 0x4, scoped, tag = 'scoped memory for tpu_custom_call.1']
    #allocation4 [shape = 's32[1]{0}', space=sflag, size = 0x4, scoped, tag = 'scoped memory for tpu_custom_call.1']
    #allocation5 [shape = 'u8[512]{0}', space=vmem, size = 0x400, scoped, tag = 'output window, operand 0, single buffered']
    %8 = vsyncpa [#allocation3], 0
    %9 = vsyncpa [#allocation4], 0
    // Predicated region
    $region2: #{tpu_custom_call.1} parent=1 // pred_check
      _
    $region3: #{tpu_custom_call.1} parent=1 // pred_check_branch
      %11 = sbr.rel (0) target = $region5
    $region4: #{tpu_custom_call.1} parent=1 // pred_region
      _
    $region5: #{tpu_custom_call.1} parent=1 // pred_fallthru
      _
    // Predicated region
    $region6: #{tpu_custom_call.1} parent=1 // pred_check
      _
    $region7: #{tpu_custom_call.1} parent=1 // pred_check_branch
      %13 = sbr.rel (0) target = $region9
    $region8: #{tpu_custom_call.1} parent=1 // pred_region
      _
    $region9: #{tpu_custom_call.1} parent=1 // pred_fallthru
      _
    // Predicated region
    $region10: #{tpu_custom_call.1} parent=1 // pred_check
      _
    $region11: #{tpu_custom_call.1} parent=1 // pred_check_branch
      %15 = sbr.rel (0) target = $region13
    $region12: #{tpu_custom_call.1} parent=1 // pred_region
      %s17 = ssub.s32 896, 896
      %18 = vsyncadd [#allocation3], %s17
      %s19 = sshll.u32 [#allocation2], 4
      %s20 = int_to_ptr.vmem [resolvable:$true] %s19
      %25 = dma.hbm_to_vmem [thread:$0]  %s2, 896, %s20, [#allocation3], 128, 128, 8
    $region13: #{tpu_custom_call.1} parent=1 // pred_fallthru
      _
    // Predicated region
    $region14: #{tpu_custom_call.1} parent=1 // pred_check
      _
    $region15: #{tpu_custom_call.1} parent=1 // pred_check_branch
      %27 = sbr.rel (0) target = $region17
    $region16: #{tpu_custom_call.1} parent=1 // pred_region
      %28 = dma.done [#allocation3], 896
    $region17: #{tpu_custom_call.1} parent=1 // pred_fallthru
      _
    %v29 = vld [vmem:[%s1] sm:$0xff]
    %vm30 = vcmask 261120
    %v31 = vsel %vm30, %v29, 0.0
    %v32 = vrot.slane %v31, 4
    %v33 = vadd.f32 %v31, %v32
    %v34 = vrot.slane %v33, 2
    %v35 = vadd.f32 %v33, %v34
    %v36 = vrot.slane %v35, 1
    %v37 = vadd.f32 %v35, %v36
    %v38 = vlaneseq
    %v39 = vand.u32 %v38, 127
    %v40 = vld [vmem:[%s0] sm:$0xff]
    %41 = vset.pattern.permute.xlu0 0
    %42 = vperm.xlu0 %41, %v40
    %v43 = vpop.permute.xlu0 %42
    %vm44 = vcmp.eq.s32.totalorder %v43, %v39
    %v45 = vsel %vm44, 1, 0
    %v46 = vcvt.s32.f32 %v45
    %vm47 = vcmask 130048
    %v48 = vsel %vm47, %v46, 0.0
    %v49 = vrot.slane %v48, 4
    %v50 = vadd.f32 %v48, %v49
    %v51 = vrot.slane %v50, 2
    %v52 = vadd.f32 %v50, %v51
    %v53 = vrot.slane %v52, 1
    %v54 = vadd.f32 %v52, %v53
    %v55 = vld [vmem:[#allocation2] sm:$0xff]
    %v56 = vld [vmem:[#allocation2 + $0x8] sm:$0xff]
    %v57 = vld [vmem:[#allocation2 + $0x10] sm:$0xff]
    %v58 = vld [vmem:[#allocation2 + $0x18] sm:$0xff]
    %v59 = vld [vmem:[#allocation2 + $0x20] sm:$0xff]
    %v60 = vld [vmem:[#allocation2 + $0x28] sm:$0xff]
    %v62 = vsel %vm47, %v54, 0
    %64 = vmatprep.subr.mxu0 0.0
    %65 = vmatpush1.msra.mxu0 %v59
    %66 = vmatprep.subr.mxu0 0.0
    %67 = vmatpush1.msra.mxu0 %v60
    %68 = vmatprep.subr.mxu0 0.0
    %69 = vmatpush1.msra.mxu0 0.0
    %70 = vmatprep.subr.mxu0 0.0
    %71 = vmatpush1.msra.mxu0 0.0
    %72 = vmatprep.subr.mxu0 0.0
    %73 = vmatpush1.msra.mxu0 0.0
    %74 = vmatprep.subr.mxu0 0.0
    %75 = vmatpush1.msra.mxu0 0.0
    %76 = vmatprep.subr.mxu0 0.0
    %77 = vmatpush1.msra.mxu0 0.0
    %78 = vmatprep.subr.mxu0 0.0
    %79 = vmatpush1.msra.mxu0 0.0
    %80 = vmatprep.subr.mxu0 0.0
    %81 = vmatpush1.msra.mxu0 0.0
    %82 = vmatprep.subr.mxu0 0.0
    %83 = vmatpush1.msra.mxu0 0.0
    %84 = vmatprep.subr.mxu0 0.0
    %85 = vmatpush1.msra.mxu0 0.0
    %86 = vmatprep.subr.mxu0 0.0
    %87 = vmatpush1.msra.mxu0 0.0
    %88 = vmatprep.subr.mxu0 0.0
    %89 = vmatpush1.msra.mxu0 0.0
    %90 = vmatprep.subr.mxu0 0.0
    %91 = vmatpush1.msra.mxu0 0.0
    %92 = vmatprep.subr.mxu0 0.0
    %93 = vmatpush1.msra.mxu0 0.0
    %94 = vmatprep.subr.mxu0 0.0
    %95 = vmatpush1.msra.mxu0 0.0
    %96 = vmatprep.subr.mxu0 0.0
    %97 = vmatpush1.msra.mxu0 0.0
    %98 = vmatprep.subr.mxu0 0.0
    %99 = vmatpush1.msra.mxu0 0.0
    %100 = vmatprep.subr.mxu0 0.0
    %101 = vmatpush1.msra.mxu0 0.0
    %102 = vmatprep.subr.mxu0 0.0
    %103 = vmatpush1.msra.mxu0 0.0
    %104 = vmatprep.subr.mxu0 0.0
    %105 = vmatpush1.msra.mxu0 0.0
    %106 = vmatprep.subr.mxu0 0.0
    %107 = vmatpush1.msra.mxu0 0.0
    %108 = vmatprep.subr.mxu0 0.0
    %109 = vmatpush1.msra.mxu0 0.0
    %110 = vmatprep.subr.mxu0 0.0
    %111 = vmatpush1.msra.mxu0 0.0
    %112 = vmatprep.subr.mxu0 0.0
    %113 = vmatpush1.msra.mxu0 0.0
    %114 = vmatprep.subr.mxu0 0.0
    %115 = vmatpush1.msra.mxu0 0.0
    %116 = vmatprep.subr.mxu0 0.0
    %117 = vmatpush1.msra.mxu0 0.0
    %118 = vmatprep.subr.mxu0 0.0
    %119 = vmatpush1.msra.mxu0 0.0
    %120 = vmatprep.subr.mxu0 0.0
    %121 = vmatpush1.msra.mxu0 0.0
    %122 = vmatprep.subr.mxu0 0.0
    %123 = vmatpush1.msra.mxu0 0.0
    %124 = vmatprep.subr.mxu0 0.0
    %125 = vmatpush1.msra.mxu0 0.0
    %126 = vmatprep.subr.mxu0 0.0
    %127 = vmatpush1.msra.mxu0 0.0
    %128 = vmatprep.mubr.f32.mxu0 0.0
    %129 = vmatmul.mubr.f32.gmra.mrb[0].mxu0 %v62
    %v130 = vpop.f32.mrb[0].mxu0
    %v131 = vadd.f32 0.0, %v130
    %v132 = vpop.f32.mrb[0].mxu0
    %133 = vdwg.mxu0
    %v135 = vsel %vm30, %v37, 0
    %137 = vmatprep.subr.mxu0 0.0
    %138 = vmatpush1.msra.mxu0 %v55
    %139 = vmatprep.subr.mxu0 0.0
    %140 = vmatpush1.msra.mxu0 %v56
    %141 = vmatprep.subr.mxu0 0.0
    %142 = vmatpush1.msra.mxu0 %v57
    %143 = vmatprep.subr.mxu0 0.0
    %144 = vmatpush1.msra.mxu0 %v58
    %145 = vmatprep.subr.mxu0 0.0
    %146 = vmatpush1.msra.mxu0 0.0
    %147 = vmatprep.subr.mxu0 0.0
    %148 = vmatpush1.msra.mxu0 0.0
    %149 = vmatprep.subr.mxu0 0.0
    %150 = vmatpush1.msra.mxu0 0.0
    %151 = vmatprep.subr.mxu0 0.0
    %152 = vmatpush1.msra.mxu0 0.0
    %153 = vmatprep.subr.mxu0 0.0
    %154 = vmatpush1.msra.mxu0 0.0
    %155 = vmatprep.subr.mxu0 0.0
    %156 = vmatpush1.msra.mxu0 0.0
    %157 = vmatprep.subr.mxu0 0.0
    %158 = vmatpush1.msra.mxu0 0.0
    %159 = vmatprep.subr.mxu0 0.0
    %160 = vmatpush1.msra.mxu0 0.0
    %161 = vmatprep.subr.mxu0 0.0
    %162 = vmatpush1.msra.mxu0 0.0
    %163 = vmatprep.subr.mxu0 0.0
    %164 = vmatpush1.msra.mxu0 0.0
    %165 = vmatprep.subr.mxu0 0.0
    %166 = vmatpush1.msra.mxu0 0.0
    %167 = vmatprep.subr.mxu0 0.0
    %168 = vmatpush1.msra.mxu0 0.0
    %169 = vmatprep.subr.mxu0 0.0
    %170 = vmatpush1.msra.mxu0 0.0
    %171 = vmatprep.subr.mxu0 0.0
    %172 = vmatpush1.msra.mxu0 0.0
    %173 = vmatprep.subr.mxu0 0.0
    %174 = vmatpush1.msra.mxu0 0.0
    %175 = vmatprep.subr.mxu0 0.0
    %176 = vmatpush1.msra.mxu0 0.0
    %177 = vmatprep.subr.mxu0 0.0
    %178 = vmatpush1.msra.mxu0 0.0
    %179 = vmatprep.subr.mxu0 0.0
    %180 = vmatpush1.msra.mxu0 0.0
    %181 = vmatprep.subr.mxu0 0.0
    %182 = vmatpush1.msra.mxu0 0.0
    %183 = vmatprep.subr.mxu0 0.0
    %184 = vmatpush1.msra.mxu0 0.0
    %185 = vmatprep.subr.mxu0 0.0
    %186 = vmatpush1.msra.mxu0 0.0
    %187 = vmatprep.subr.mxu0 0.0
    %188 = vmatpush1.msra.mxu0 0.0
    %189 = vmatprep.subr.mxu0 0.0
    %190 = vmatpush1.msra.mxu0 0.0
    %191 = vmatprep.subr.mxu0 0.0
    %192 = vmatpush1.msra.mxu0 0.0
    %193 = vmatprep.subr.mxu0 0.0
    %194 = vmatpush1.msra.mxu0 0.0
    %195 = vmatprep.subr.mxu0 0.0
    %196 = vmatpush1.msra.mxu0 0.0
    %197 = vmatprep.subr.mxu0 0.0
    %198 = vmatpush1.msra.mxu0 0.0
    %199 = vmatprep.subr.mxu0 0.0
    %200 = vmatpush1.msra.mxu0 0.0
    %201 = vmatprep.mubr.f32.mxu0 0.0
    %202 = vmatmul.mubr.f32.gmra.mrb[0].mxu0 %v135
    %v203 = vpop.f32.mrb[0].mxu0
    %v204 = vadd.f32 %v131, %v203
    %v205 = vpop.f32.mrb[0].mxu0
    %206 = vdwg.mxu0
    %v207 = vld [vmem:[#allocation2 + $0x30] sm:$0x1]
    %v208 = vmul.f32 %v207, 8.0
    %v209 = vadd.f32 %v204, %v208
    %210 = vst [vmem:[#allocation5] sm:$0x1] %v209
    // Predicated region
    $region18: #{tpu_custom_call.1} parent=1 // pred_check
      _
    $region19: #{tpu_custom_call.1} parent=1 // pred_check_branch
      %212 = sbr.rel (0) target = $region21
    $region20: #{tpu_custom_call.1} parent=1 // pred_region
      %s214 = ssub.s32 16, 16
      %215 = vsyncadd [#allocation4], %s214
      %s217 = sshll.u32 [#allocation5], 4
      %s218 = int_to_ptr.vmem [resolvable:$true] %s217
      %220 = dma.vmem_to_hbm [thread:$0]  %s218, 16, %s3, [#allocation4]
    $region21: #{tpu_custom_call.1} parent=1 // pred_fallthru
      _
    // Predicated region
    $region22: #{tpu_custom_call.1} parent=1 // pred_check
      _
    $region23: #{tpu_custom_call.1} parent=1 // pred_check_branch
      %222 = sbr.rel (0) target = $region25
    $region24: #{tpu_custom_call.1} parent=1 // pred_region
      %223 = dma.done [#allocation4], 16
    $region25: #{tpu_custom_call.1} parent=1 // pred_fallthru
      _
    %224 = vsyncpa [#allocation3], 1
    %225 = vsyncpa [#allocation4], 1

</llo_original>
